<compile_context>
chip_gen: v5e
topology: v5e:2x2
jax: 0.10.0
libtpu: 0.0.40
codegen_flags: <defaults>
</compile_context>

<pallas_src>
import math
import jax
import jax.numpy as jnp
from jax.experimental import pallas as pl
from jax.experimental.pallas import tpu as pltpu

_LOG_2PI = math.log(2.0 * math.pi)


def normflow_kernel(b_ref, wu_ref, x_ref, mu_ref, logvar_ref, w_ref, u_ref,
                    xo_ref, lp_ref, ld_ref):
    # Lane-dense layout: batch on the 128-lane axis.
    x = x_ref[...].astype(jnp.float32)            # [D, TB]
    mu = mu_ref[...]                              # [D, 1]
    logvar = logvar_ref[...]                      # [D, 1]

    # --- base-distribution log prob: Normal(mu, exp(0.5*log_var)) ------------
    diff = x - mu
    lp = (-0.5 * diff * diff * jnp.exp(-logvar)
          - 0.5 * logvar
          - 0.5 * jnp.float32(_LOG_2PI))
    lp_ref[...] = jnp.sum(lp, axis=0, keepdims=True)          # [1, TB]

    # --- planar-flow stack (flow_length is small -> static unroll) -----------
    w_all = w_ref[...]                                        # [D, L] (hoisted load)
    u_all = u_ref[...]                                        # [D, L]
    num_flows = w_all.shape[1]

    log_det = jnp.zeros((1, x.shape[1]), jnp.float32)
    for l in range(num_flows):
        w = w_all[:, l:l + 1]                                 # [D, 1]
        u = u_all[:, l:l + 1]                                 # [D, 1]
        b = b_ref[l]                                          # scalar f32 (SMEM)
        wu = wu_ref[l]                                        # scalar f32 (SMEM) = w_l . u_l
        a = jnp.sum(x * w, axis=0, keepdims=True) + b         # [1, TB]
        t = jnp.tanh(a)                                       # [1, TB] (EUP)
        x = x + u * t                                         # [D, TB]
        det = 1.0 + (1.0 - t * t) * wu                        # [1, TB]
        log_det = log_det + jnp.log(jnp.abs(det) + 1e-15)

    xo_ref[...] = x.astype(xo_ref.dtype)
    ld_ref[...] = log_det


def normalizing_flow_forward(x, mu, log_var, W, U, B, *, tb=1024):
    """Full NormalizingFlow.forward in one Pallas kernel, tiled over the batch
    (batch on the 128-lane axis)."""
    bsz, dim = x.shape
    L = W.shape[0]
    LANE = 128

    # --- choose a lane-aligned batch tile; keep >=2 grid steps when possible
    #     (v7x megacore shards the "parallel" axis across both TensorCores) ---
    bsz_lane = ((bsz + LANE - 1) // LANE) * LANE
    tb = max(LANE, (min(tb, bsz_lane) // LANE) * LANE)
    if bsz_lane > LANE and tb >= bsz_lane:
        tb = max(LANE, ((bsz_lane // 2) // LANE) * LANE)
    bsz_pad = ((bsz + tb - 1) // tb) * tb
    grid = bsz_pad // tb

    # --- lane-dense wrapper-side layout plumbing ------------------------------
    xT = jnp.pad(x.T, ((0, 0), (0, bsz_pad - bsz)))              # [D, Bp]
    muT = mu.reshape(dim, 1).astype(jnp.float32)                 # [D, 1]
    lvT = log_var.reshape(dim, 1).astype(jnp.float32)            # [D, 1]
    Wt = W.T.astype(jnp.float32)                                 # [D, L]
    Ut = U.T.astype(jnp.float32)                                 # [D, L]
    b_s = B.reshape(L).astype(jnp.float32)                       # [L]  -> SMEM
    wu_s = jnp.sum(W * U, axis=-1).astype(jnp.float32)           # [L]  -> SMEM (w_l . u_l)

    smem_spec = pl.BlockSpec(memory_space=pltpu.MemorySpace.SMEM)
    x_spec = pl.BlockSpec((dim, tb), lambda i: (0, i))
    vec_spec = pl.BlockSpec((dim, 1), lambda i: (0, 0))          # mu / log_var (broadcast)
    wmat_spec = pl.BlockSpec((dim, L), lambda i: (0, 0))         # W / U (broadcast)
    row_spec = pl.BlockSpec((1, tb), lambda i: (0, i))           # lane-dense lp / log_det

    xoT, lp, ld = pl.pallas_call(
        normflow_kernel,
        grid=(grid,),
        in_specs=[smem_spec, smem_spec, x_spec, vec_spec, vec_spec,
                  wmat_spec, wmat_spec],
        out_specs=(x_spec, row_spec, row_spec),
        out_shape=(
            jax.ShapeDtypeStruct((dim, bsz_pad), x.dtype),
            jax.ShapeDtypeStruct((1, bsz_pad), jnp.float32),
            jax.ShapeDtypeStruct((1, bsz_pad), jnp.float32),
        ),
        compiler_params=pltpu.CompilerParams(
            dimension_semantics=("parallel",)),
    )(b_s, wu_s, xT, muT, lvT, Wt, Ut)

    return xoT.T[:bsz], lp[0, :bsz], ld[0, :bsz]


def normalizing_flow_reference(x, mu, log_var, W, U, B):
    """Pure-JAX reference mirroring the PyTorch module (for validation)."""
    std = jnp.exp(0.5 * log_var)
    lp = (-0.5 * ((x - mu) / std) ** 2 - jnp.log(std)
          - 0.5 * math.log(2.0 * math.pi)).sum(axis=-1)
    log_det = jnp.zeros(x.shape[0], jnp.float32)
    for l in range(W.shape[0]):
        w, u, b = W[l], U[l], B[l, 0]
        a = x @ w + b                                           # [B]
        t = jnp.tanh(a)[:, None]                                # [B, 1]
        x = x + u[None, :] * t
        det = 1.0 + (1.0 - t[:, 0] ** 2) * jnp.dot(w, u)
        log_det = log_det + jnp.log(jnp.abs(det) + 1e-15)
    return x, lp, log_det


if __name__ == "__main__":
    dim = 8
    flow_length = 4
    batch = 200          # not a multiple of 128 -> exercises ragged-batch padding

    key = jax.random.PRNGKey(0)
    k_mu, k_lv, k_w, k_u, k_b, k_x = jax.random.split(key, 6)

    # Deterministic init matching torch's uniform_(-0.01, 0.01) for all params.
    mu = jax.random.uniform(k_mu, (dim,), jnp.float32, -0.01, 0.01)
    log_var = jax.random.uniform(k_lv, (dim,), jnp.float32, -0.01, 0.01)
    W = jax.random.uniform(k_w, (flow_length, dim), jnp.float32, -0.01, 0.01)
    U = jax.random.uniform(k_u, (flow_length, dim), jnp.float32, -0.01, 0.01)
    B = jax.random.uniform(k_b, (flow_length, 1), jnp.float32, -0.01, 0.01)

    x = jax.random.normal(k_x, (batch, dim), jnp.float32)

    xo, lp, ld = normalizing_flow_forward(x, mu, log_var, W, U, B)
    jax.block_until_ready((xo, lp, ld))

    xo_ref, lp_ref, ld_ref = normalizing_flow_reference(x, mu, log_var, W, U, B)
    assert jnp.allclose(xo, xo_ref, atol=1e-5), "x_out mismatch"
    assert jnp.allclose(lp, lp_ref, atol=1e-5), "log_prob_base mismatch"
    assert jnp.allclose(ld, ld_ref, atol=1e-5), "log_det mismatch"

    print("KERNEL_OK")
</pallas_src>

<mosaic_0001>
module attributes {stable_mosaic.version = 11 : i64} {
  func.func @normflow_kernel(%arg0: i32, %arg1: memref<4xf32, #tpu.memory_space<smem>>, %arg2: memref<4xf32, #tpu.memory_space<smem>>, %arg3: memref<8x128xf32, #tpu.memory_space<vmem>>, %arg4: memref<8x1xf32, #tpu.memory_space<vmem>>, %arg5: memref<8x1xf32, #tpu.memory_space<vmem>>, %arg6: memref<8x4xf32, #tpu.memory_space<vmem>>, %arg7: memref<8x4xf32, #tpu.memory_space<vmem>>, %arg8: memref<8x128xf32, #tpu.memory_space<vmem>>, %arg9: memref<1x128xf32, #tpu.memory_space<vmem>>, %arg10: memref<1x128xf32, #tpu.memory_space<vmem>>) attributes {dimension_semantics = [#tpu.dimension_semantics<parallel>], iteration_bounds = array<i64: 2>, scalar_prefetch = 0 : i64, scratch_operands = 0 : i64, tpu.core_type = #tpu.core_type<tc>, window_params = [{transform_indices = @transform_0, window_bounds = array<i64: 4>}, {transform_indices = @transform_1, window_bounds = array<i64: 4>}, {transform_indices = @transform_2, window_bounds = array<i64: 8, 128>}, {pipeline_mode = #tpu.pipeline_mode<synchronous>, transform_indices = @transform_3, window_bounds = array<i64: 8, 1>}, {pipeline_mode = #tpu.pipeline_mode<synchronous>, transform_indices = @transform_4, window_bounds = array<i64: 8, 1>}, {pipeline_mode = #tpu.pipeline_mode<synchronous>, transform_indices = @transform_5, window_bounds = array<i64: 8, 4>}, {pipeline_mode = #tpu.pipeline_mode<synchronous>, transform_indices = @transform_6, window_bounds = array<i64: 8, 4>}, {transform_indices = @transform_7, window_bounds = array<i64: 8, 128>}, {transform_indices = @transform_8, window_bounds = array<i64: 1, 128>}, {transform_indices = @transform_9, window_bounds = array<i64: 1, 128>}]} {
    %c0 = arith.constant 0 : index
    %c0_0 = arith.constant 0 : index
    %0 = vector.load %arg3[%c0, %c0_0] : memref<8x128xf32, #tpu.memory_space<vmem>>, vector<8x128xf32>
    %c0_1 = arith.constant 0 : index
    %c0_2 = arith.constant 0 : index
    %1 = vector.load %arg4[%c0_1, %c0_2] : memref<8x1xf32, #tpu.memory_space<vmem>>, vector<8x1xf32>
    %c0_3 = arith.constant 0 : index
    %c0_4 = arith.constant 0 : index
    %2 = vector.load %arg5[%c0_3, %c0_4] : memref<8x1xf32, #tpu.memory_space<vmem>>, vector<8x1xf32>
    %3 = vector.broadcast %1 : vector<8x1xf32> to vector<8x128xf32>
    %4 = arith.subf %0, %3 : vector<8x128xf32>
    %cst = arith.constant -5.000000e-01 : f32
    %5 = vector.broadcast %cst : f32 to vector<8x128xf32>
    %6 = arith.mulf %5, %4 : vector<8x128xf32>
    %7 = arith.mulf %6, %4 : vector<8x128xf32>
    %cst_5 = arith.constant 0.000000e+00 : f32
    %8 = vector.broadcast %cst_5 : f32 to vector<8x1xf32>
    %9 = arith.subf %8, %2 : vector<8x1xf32>
    %10 = math.exp %9 : vector<8x1xf32>
    %11 = vector.broadcast %10 : vector<8x1xf32> to vector<8x128xf32>
    %12 = arith.mulf %7, %11 : vector<8x128xf32>
    %cst_6 = arith.constant 5.000000e-01 : f32
    %13 = vector.broadcast %cst_6 : f32 to vector<8x1xf32>
    %14 = arith.mulf %13, %2 : vector<8x1xf32>
    %15 = vector.broadcast %14 : vector<8x1xf32> to vector<8x128xf32>
    %16 = arith.subf %12, %15 : vector<8x128xf32>
    %cst_7 = arith.constant 5.000000e-01 : f32
    %cst_8 = arith.constant 1.83787704 : f32
    %17 = arith.mulf %cst_7, %cst_8 : f32
    %18 = vector.broadcast %17 : f32 to vector<8x128xf32>
    %19 = arith.subf %16, %18 : vector<8x128xf32>
    %cst_9 = arith.constant dense<0.000000e+00> : vector<128xf32>
    %20 = vector.multi_reduction <add>, %19, %cst_9 [0] : vector<8x128xf32> to vector<128xf32>
    %21 = vector.shape_cast %20 : vector<128xf32> to vector<1x128xf32>
    %c0_10 = arith.constant 0 : index
    %c0_11 = arith.constant 0 : index
    %22 = vector.load %arg9[%c0_10, %c0_11] : memref<1x128xf32, #tpu.memory_space<vmem>>, vector<1x128xf32>
    tpu.vector_store %arg9[%c0_10, %c0_11], %21 {strides = array<i32>} : memref<1x128xf32, #tpu.memory_space<vmem>>, vector<1x128xf32>,
    %c0_12 = arith.constant 0 : index
    %c0_13 = arith.constant 0 : index
    %23 = vector.load %arg6[%c0_12, %c0_13] : memref<8x4xf32, #tpu.memory_space<vmem>>, vector<8x4xf32>
    %c0_14 = arith.constant 0 : index
    %c0_15 = arith.constant 0 : index
    %24 = vector.load %arg7[%c0_14, %c0_15] : memref<8x4xf32, #tpu.memory_space<vmem>>, vector<8x4xf32>
    %cst_16 = arith.constant 0.000000e+00 : f32
    %25 = vector.broadcast %cst_16 : f32 to vector<1x128xf32>
    %26 = vector.extract_strided_slice %23 {offsets = [0, 0], sizes = [8, 1], strides = [1, 1]} : vector<8x4xf32> to vector<8x1xf32>
    %27 = vector.extract_strided_slice %24 {offsets = [0, 0], sizes = [8, 1], strides = [1, 1]} : vector<8x4xf32> to vector<8x1xf32>
    %c0_17 = arith.constant 0 : index
    %28 = memref.load %arg1[%c0_17] : memref<4xf32, #tpu.memory_space<smem>>
    %c0_18 = arith.constant 0 : index
    %29 = memref.load %arg2[%c0_18] : memref<4xf32, #tpu.memory_space<smem>>
    %30 = vector.broadcast %26 : vector<8x1xf32> to vector<8x128xf32>
    %31 = arith.mulf %0, %30 : vector<8x128xf32>
    %cst_19 = arith.constant dense<0.000000e+00> : vector<128xf32>
    %32 = vector.multi_reduction <add>, %31, %cst_19 [0] : vector<8x128xf32> to vector<128xf32>
    %33 = vector.shape_cast %32 : vector<128xf32> to vector<1x128xf32>
    %34 = vector.broadcast %28 : f32 to vector<1x128xf32>
    %35 = arith.addf %33, %34 : vector<1x128xf32>
    %36 = math.tanh %35 : vector<1x128xf32>
    %37 = vector.broadcast %27 : vector<8x1xf32> to vector<8x128xf32>
    %38 = vector.broadcast %36 : vector<1x128xf32> to vector<8x128xf32>
    %39 = arith.mulf %37, %38 : vector<8x128xf32>
    %40 = arith.addf %0, %39 : vector<8x128xf32>
    %41 = arith.mulf %36, %36 : vector<1x128xf32>
    %cst_20 = arith.constant 1.000000e+00 : f32
    %42 = vector.broadcast %cst_20 : f32 to vector<1x128xf32>
    %43 = arith.subf %42, %41 : vector<1x128xf32>
    %44 = vector.broadcast %29 : f32 to vector<1x128xf32>
    %45 = arith.mulf %43, %44 : vector<1x128xf32>
    %cst_21 = arith.constant 1.000000e+00 : f32
    %46 = vector.broadcast %cst_21 : f32 to vector<1x128xf32>
    %47 = arith.addf %46, %45 : vector<1x128xf32>
    %48 = math.absf %47 : vector<1x128xf32>
    %cst_22 = arith.constant 1.000000e-15 : f32
    %49 = vector.broadcast %cst_22 : f32 to vector<1x128xf32>
    %50 = arith.addf %48, %49 : vector<1x128xf32>
    %51 = math.log %50 : vector<1x128xf32>
    %52 = arith.addf %25, %51 : vector<1x128xf32>
    %53 = vector.extract_strided_slice %23 {offsets = [0, 1], sizes = [8, 1], strides = [1, 1]} : vector<8x4xf32> to vector<8x1xf32>
    %54 = vector.extract_strided_slice %24 {offsets = [0, 1], sizes = [8, 1], strides = [1, 1]} : vector<8x4xf32> to vector<8x1xf32>
    %c1 = arith.constant 1 : index
    %55 = memref.load %arg1[%c1] : memref<4xf32, #tpu.memory_space<smem>>
    %c1_23 = arith.constant 1 : index
    %56 = memref.load %arg2[%c1_23] : memref<4xf32, #tpu.memory_space<smem>>
    %57 = vector.broadcast %53 : vector<8x1xf32> to vector<8x128xf32>
    %58 = arith.mulf %40, %57 : vector<8x128xf32>
    %cst_24 = arith.constant dense<0.000000e+00> : vector<128xf32>
    %59 = vector.multi_reduction <add>, %58, %cst_24 [0] : vector<8x128xf32> to vector<128xf32>
    %60 = vector.shape_cast %59 : vector<128xf32> to vector<1x128xf32>
    %61 = vector.broadcast %55 : f32 to vector<1x128xf32>
    %62 = arith.addf %60, %61 : vector<1x128xf32>
    %63 = math.tanh %62 : vector<1x128xf32>
    %64 = vector.broadcast %54 : vector<8x1xf32> to vector<8x128xf32>
    %65 = vector.broadcast %63 : vector<1x128xf32> to vector<8x128xf32>
    %66 = arith.mulf %64, %65 : vector<8x128xf32>
    %67 = arith.addf %40, %66 : vector<8x128xf32>
    %68 = arith.mulf %63, %63 : vector<1x128xf32>
    %cst_25 = arith.constant 1.000000e+00 : f32
    %69 = vector.broadcast %cst_25 : f32 to vector<1x128xf32>
    %70 = arith.subf %69, %68 : vector<1x128xf32>
    %71 = vector.broadcast %56 : f32 to vector<1x128xf32>
    %72 = arith.mulf %70, %71 : vector<1x128xf32>
    %cst_26 = arith.constant 1.000000e+00 : f32
    %73 = vector.broadcast %cst_26 : f32 to vector<1x128xf32>
    %74 = arith.addf %73, %72 : vector<1x128xf32>
    %75 = math.absf %74 : vector<1x128xf32>
    %cst_27 = arith.constant 1.000000e-15 : f32
    %76 = vector.broadcast %cst_27 : f32 to vector<1x128xf32>
    %77 = arith.addf %75, %76 : vector<1x128xf32>
    %78 = math.log %77 : vector<1x128xf32>
    %79 = arith.addf %52, %78 : vector<1x128xf32>
    %80 = vector.extract_strided_slice %23 {offsets = [0, 2], sizes = [8, 1], strides = [1, 1]} : vector<8x4xf32> to vector<8x1xf32>
    %81 = vector.extract_strided_slice %24 {offsets = [0, 2], sizes = [8, 1], strides = [1, 1]} : vector<8x4xf32> to vector<8x1xf32>
    %c2 = arith.constant 2 : index
    %82 = memref.load %arg1[%c2] : memref<4xf32, #tpu.memory_space<smem>>
    %c2_28 = arith.constant 2 : index
    %83 = memref.load %arg2[%c2_28] : memref<4xf32, #tpu.memory_space<smem>>
    %84 = vector.broadcast %80 : vector<8x1xf32> to vector<8x128xf32>
    %85 = arith.mulf %67, %84 : vector<8x128xf32>
    %cst_29 = arith.constant dense<0.000000e+00> : vector<128xf32>
    %86 = vector.multi_reduction <add>, %85, %cst_29 [0] : vector<8x128xf32> to vector<128xf32>
    %87 = vector.shape_cast %86 : vector<128xf32> to vector<1x128xf32>
    %88 = vector.broadcast %82 : f32 to vector<1x128xf32>
    %89 = arith.addf %87, %88 : vector<1x128xf32>
    %90 = math.tanh %89 : vector<1x128xf32>
    %91 = vector.broadcast %81 : vector<8x1xf32> to vector<8x128xf32>
    %92 = vector.broadcast %90 : vector<1x128xf32> to vector<8x128xf32>
    %93 = arith.mulf %91, %92 : vector<8x128xf32>
    %94 = arith.addf %67, %93 : vector<8x128xf32>
    %95 = arith.mulf %90, %90 : vector<1x128xf32>
    %cst_30 = arith.constant 1.000000e+00 : f32
    %96 = vector.broadcast %cst_30 : f32 to vector<1x128xf32>
    %97 = arith.subf %96, %95 : vector<1x128xf32>
    %98 = vector.broadcast %83 : f32 to vector<1x128xf32>
    %99 = arith.mulf %97, %98 : vector<1x128xf32>
    %cst_31 = arith.constant 1.000000e+00 : f32
    %100 = vector.broadcast %cst_31 : f32 to vector<1x128xf32>
    %101 = arith.addf %100, %99 : vector<1x128xf32>
    %102 = math.absf %101 : vector<1x128xf32>
    %cst_32 = arith.constant 1.000000e-15 : f32
    %103 = vector.broadcast %cst_32 : f32 to vector<1x128xf32>
    %104 = arith.addf %102, %103 : vector<1x128xf32>
    %105 = math.log %104 : vector<1x128xf32>
    %106 = arith.addf %79, %105 : vector<1x128xf32>
    %107 = vector.extract_strided_slice %23 {offsets = [0, 3], sizes = [8, 1], strides = [1, 1]} : vector<8x4xf32> to vector<8x1xf32>
    %108 = vector.extract_strided_slice %24 {offsets = [0, 3], sizes = [8, 1], strides = [1, 1]} : vector<8x4xf32> to vector<8x1xf32>
    %c3 = arith.constant 3 : index
    %109 = memref.load %arg1[%c3] : memref<4xf32, #tpu.memory_space<smem>>
    %c3_33 = arith.constant 3 : index
    %110 = memref.load %arg2[%c3_33] : memref<4xf32, #tpu.memory_space<smem>>
    %111 = vector.broadcast %107 : vector<8x1xf32> to vector<8x128xf32>
    %112 = arith.mulf %94, %111 : vector<8x128xf32>
    %cst_34 = arith.constant dense<0.000000e+00> : vector<128xf32>
    %113 = vector.multi_reduction <add>, %112, %cst_34 [0] : vector<8x128xf32> to vector<128xf32>
    %114 = vector.shape_cast %113 : vector<128xf32> to vector<1x128xf32>
    %115 = vector.broadcast %109 : f32 to vector<1x128xf32>
    %116 = arith.addf %114, %115 : vector<1x128xf32>
    %117 = math.tanh %116 : vector<1x128xf32>
    %118 = vector.broadcast %108 : vector<8x1xf32> to vector<8x128xf32>
    %119 = vector.broadcast %117 : vector<1x128xf32> to vector<8x128xf32>
    %120 = arith.mulf %118, %119 : vector<8x128xf32>
    %121 = arith.addf %94, %120 : vector<8x128xf32>
    %122 = arith.mulf %117, %117 : vector<1x128xf32>
    %cst_35 = arith.constant 1.000000e+00 : f32
    %123 = vector.broadcast %cst_35 : f32 to vector<1x128xf32>
    %124 = arith.subf %123, %122 : vector<1x128xf32>
    %125 = vector.broadcast %110 : f32 to vector<1x128xf32>
    %126 = arith.mulf %124, %125 : vector<1x128xf32>
    %cst_36 = arith.constant 1.000000e+00 : f32
    %127 = vector.broadcast %cst_36 : f32 to vector<1x128xf32>
    %128 = arith.addf %127, %126 : vector<1x128xf32>
    %129 = math.absf %128 : vector<1x128xf32>
    %cst_37 = arith.constant 1.000000e-15 : f32
    %130 = vector.broadcast %cst_37 : f32 to vector<1x128xf32>
    %131 = arith.addf %129, %130 : vector<1x128xf32>
    %132 = math.log %131 : vector<1x128xf32>
    %133 = arith.addf %106, %132 : vector<1x128xf32>
    %c0_38 = arith.constant 0 : index
    %c0_39 = arith.constant 0 : index
    %134 = vector.load %arg8[%c0_38, %c0_39] : memref<8x128xf32, #tpu.memory_space<vmem>>, vector<8x128xf32>
    tpu.vector_store %arg8[%c0_38, %c0_39], %121 {strides = array<i32>} : memref<8x128xf32, #tpu.memory_space<vmem>>, vector<8x128xf32>,
    %c0_40 = arith.constant 0 : index
    %c0_41 = arith.constant 0 : index
    %135 = vector.load %arg10[%c0_40, %c0_41] : memref<1x128xf32, #tpu.memory_space<vmem>>, vector<1x128xf32>
    tpu.vector_store %arg10[%c0_40, %c0_41], %133 {strides = array<i32>} : memref<1x128xf32, #tpu.memory_space<vmem>>, vector<1x128xf32>,
    return
  }
  func.func @transform_0(%arg0: i32) -> i32 {
    %c0_i32 = arith.constant 0 : i32
    %c0_i32_0 = arith.constant 0 : i32
    return %c0_i32 : i32
  }
  func.func @transform_1(%arg0: i32) -> i32 {
    %c0_i32 = arith.constant 0 : i32
    %c0_i32_0 = arith.constant 0 : i32
    return %c0_i32 : i32
  }
  func.func @transform_2(%arg0: i32) -> (i32, i32) {
    %c0_i32 = arith.constant 0 : i32
    %c0_i32_0 = arith.constant 0 : i32
    return %c0_i32, %arg0 : i32, i32
  }
  func.func @transform_3(%arg0: i32) -> (i32, i32) {
    %c0_i32 = arith.constant 0 : i32
    %c0_i32_0 = arith.constant 0 : i32
    %c0_i32_1 = arith.constant 0 : i32
    return %c0_i32, %c0_i32_0 : i32, i32
  }
  func.func @transform_4(%arg0: i32) -> (i32, i32) {
    %c0_i32 = arith.constant 0 : i32
    %c0_i32_0 = arith.constant 0 : i32
    %c0_i32_1 = arith.constant 0 : i32
    return %c0_i32, %c0_i32_0 : i32, i32
  }
  func.func @transform_5(%arg0: i32) -> (i32, i32) {
    %c0_i32 = arith.constant 0 : i32
    %c0_i32_0 = arith.constant 0 : i32
    %c0_i32_1 = arith.constant 0 : i32
    return %c0_i32, %c0_i32_0 : i32, i32
  }
  func.func @transform_6(%arg0: i32) -> (i32, i32) {
    %c0_i32 = arith.constant 0 : i32
    %c0_i32_0 = arith.constant 0 : i32
    %c0_i32_1 = arith.constant 0 : i32
    return %c0_i32, %c0_i32_0 : i32, i32
  }
  func.func @transform_7(%arg0: i32) -> (i32, i32) {
    %c0_i32 = arith.constant 0 : i32
    %c0_i32_0 = arith.constant 0 : i32
    return %c0_i32, %arg0 : i32, i32
  }
  func.func @transform_8(%arg0: i32) -> (i32, i32) {
    %c0_i32 = arith.constant 0 : i32
    %c0_i32_0 = arith.constant 0 : i32
    return %c0_i32, %arg0 : i32, i32
  }
  func.func @transform_9(%arg0: i32) -> (i32, i32) {
    %c0_i32 = arith.constant 0 : i32
    %c0_i32_0 = arith.constant 0 : i32
    return %c0_i32, %arg0 : i32, i32
  }
}

</mosaic_0001>

<llo_original>
// kernel: tpu_custom_call.1
$region0: #{tpu_custom_call.1}
  #allocation0 [shape = 'u32[]', space=smem, size = 0x4, offset = 0x4, fixed_abs, tag = 'smem constant byte address 0x4 - core index']
  #allocation1 [shape = 'u32[72,128]{1,0:T(1,128)}', space=vmem, size = 0x9000, scoped, tag = 'internal scratch']
  %s0 = inlined_call_operand.vmem [shape: f32[4], index: 0, kind: input, shape index: {}]
  %s1 = inlined_call_operand.vmem [shape: f32[4], index: 1, kind: input, shape index: {}]
  %s2 = inlined_call_operand.vmem [shape: f32[8,256], index: 2, kind: input, shape index: {}]
  %s3 = inlined_call_operand.vmem [shape: f32[8,1], index: 3, kind: input, shape index: {}]
  %s4 = inlined_call_operand.vmem [shape: f32[8,1], index: 4, kind: input, shape index: {}]
  %s5 = inlined_call_operand.vmem [shape: f32[8,4], index: 5, kind: input, shape index: {}]
  %s6 = inlined_call_operand.vmem [shape: f32[8,4], index: 6, kind: input, shape index: {}]
  %s7 = inlined_call_operand.hbm [shape: f32[8,256], index: 7, kind: output, shape index: {0}]
  %s8 = inlined_call_operand.hbm [shape: f32[1,256], index: 8, kind: output, shape index: {1}]
  %s9 = inlined_call_operand.hbm [shape: f32[1,256], index: 9, kind: output, shape index: {2}]
  %10 = xla_tuple %s7, %s8, %s9
  %s11 = sld [smem:[#allocation0]]
  $region85: #{tpu_custom_call.1} parent=0
    _
  %s13 = ssub.s32 1, %s11
  %s14 = scalar_select 0, %s13, %s11
  $region1: #{tpu_custom_call.1} parent=0
    #allocation2 [shape = 'u8[512]{0}', space=smem, size = 0x200, scoped, tag = 'input window, operand 0, single buffered']
    #allocation3 [shape = 's32[2]{0}', space=sflag, size = 0x8, scoped, tag = 'scoped memory for tpu_custom_call.1']
    #allocation4 [shape = 's32[2]{0}', space=sflag, size = 0x8, scoped, tag = 'scoped memory for tpu_custom_call.1']
    #allocation5 [shape = 'u8[512]{0}', space=smem, size = 0x200, scoped, tag = 'input window, operand 1, single buffered']
    #allocation6 [shape = 's32[1]{0}', space=sflag, size = 0x4, scoped, tag = 'scoped memory for tpu_custom_call.1']
    #allocation7 [shape = 'u8[8192]{0}', space=vmem, size = 0x2000, scoped, tag = 'output window, operand 0']
    #allocation8 [shape = 'u8[1024]{0}', space=vmem, size = 0x400, scoped, tag = 'output window, operand 1']
    #allocation9 [shape = 's32[2]{0}', space=sflag, size = 0x8, scoped, tag = 'scoped memory for tpu_custom_call.1']
    #allocation10 [shape = 'u8[1024]{0}', space=vmem, size = 0x400, scoped, tag = 'output window, operand 2']
    %15 = vsyncpa [#allocation4], 0
    %16 = vsyncpa [#allocation6], 0
    %17 = vsyncpa [#allocation3], 0
    %s18 = scalar_lea.sflag [#allocation3], 1
    %19 = vsyncpa %s18, 0
    %20 = vsyncpa [#allocation9], 0
    %s21 = scalar_lea.sflag [#allocation9], 1
    %22 = vsyncpa %s21, 0
    loop: start=0, step=1, limit=4
    $region2: #{tpu_custom_call.1} parent=1 // loop_pre_header
      _
    $region3: #{tpu_custom_call.1} parent=1 // loop_header
      %s24 = sphi 0, %s28
      %p25 = scmp.ge.s32.totalorder %s24, 4
      %s32 = sphi 0, %s32
      %s34 = sphi 0, %s32
      %s35 = sphi 0, %s34
      %s49 = sphi 0, %s35
      %s53 = sphi 0, %s53
      %s55 = sphi 0, %s53
      %s56 = sphi 0, %s55
      %s70 = sphi 0, %s56
      %s76 = sphi 0, %s78
      %s79 = sphi 0, %s76
      %s80 = sphi 0, %s79
      %s96 = sphi 0, %s80
      %s100 = sphi 0, %s100
      %s102 = sphi 0, %s100
      %s103 = sphi 0, %s102
      %s117 = sphi 0, %s103
      %s121 = sphi 0, %s121
      %s123 = sphi 0, %s121
      %s124 = sphi 0, %s123
      %s138 = sphi 0, %s124
      %s142 = sphi 0, %s142
      %s144 = sphi 0, %s142
      %s145 = sphi 0, %s144
      %s159 = sphi 0, %s145
      %s163 = sphi 0, %s163
      %s165 = sphi 0, %s163
      %s166 = sphi 0, %s165
      %s180 = sphi 0, %s166
      %s186 = sphi 0, %s188
      %s189 = sphi 0, %s186
      %s190 = sphi 0, %s189
      %s206 = sphi 0, %s190
      %s212 = sphi 0, %s214
      %s215 = sphi 0, %s212
      %s216 = sphi 0, %s215
      %s232 = sphi 0, %s216
      %s238 = sphi 0, %s240
      %s241 = sphi 0, %s238
      %s242 = sphi 0, %s241
      %s258 = sphi 0, %s242
    $region4: #{tpu_custom_call.1} parent=1 // loop_header_branch
      %27 = sbr.rel (%p25) target = $region8
    $region5: #{tpu_custom_call.1} parent=1 // loop_body
      %s29 = ssub.s32 %s24, 1
      %s30 = ssub.s32 %s24, 2
      %s31 = sadd.s32 %s24, 1
      %s33 = sadd.s32 %s32, 1
      %p36 = scmp.eq.s32.totalorder %s24, 1
      %p37 = scmp.ne.s32.totalorder %s32, %s34
      %p38 = scmp.eq.s32.totalorder %s24, 0
      %p39 = por %p37, %p38
      %p40 = scmp.ne.s32.totalorder %s32, %s34
      %p41 = scmp.eq.s32.totalorder %s29, 1
      %p42 = por %p40, %p41
      %p43 = scmp.ne.s32.totalorder %s34, %s35
      %p44 = scmp.eq.s32.totalorder %s29, 0
      %p45 = por %p43, %p44
      %p46 = scmp.ne.s32.totalorder %s34, %s35
      %p47 = scmp.eq.s32.totalorder %s30, 1
      %p48 = por %p46, %p47
      %p50 = scmp.ne.s32.totalorder %s35, %s49
      %p51 = scmp.eq.s32.totalorder %s30, 0
      %p52 = por %p50, %p51
      %s54 = sadd.s32 %s53, 1
      %p57 = scmp.eq.s32.totalorder %s24, 1
      %p58 = scmp.ne.s32.totalorder %s53, %s55
      %p59 = scmp.eq.s32.totalorder %s24, 0
      %p60 = por %p58, %p59
      %p61 = scmp.ne.s32.totalorder %s53, %s55
      %p62 = scmp.eq.s32.totalorder %s29, 1
      %p63 = por %p61, %p62
      %p64 = scmp.ne.s32.totalorder %s55, %s56
      %p65 = scmp.eq.s32.totalorder %s29, 0
      %p66 = por %p64, %p65
      %p67 = scmp.ne.s32.totalorder %s55, %s56
      %p68 = scmp.eq.s32.totalorder %s30, 1
      %p69 = por %p67, %p68
      %p71 = scmp.ne.s32.totalorder %s56, %s70
      %p72 = scmp.eq.s32.totalorder %s30, 0
      %p73 = por %p71, %p72
      %s74 = ssub.s32 %s24, %s31
      %p75 = scmp.eq.s32.totalorder %s74, 0
      %s77 = sadd.s32 %s76, 1
      %s78 = scalar_select %p75, %s76, %s77
      %p81 = pneg %p75
      %p82 = scmp.eq.s32.totalorder %s24, 1
      %p83 = por %p81, %p82
      %p84 = scmp.ne.s32.totalorder %s76, %s79
      %p85 = scmp.eq.s32.totalorder %s24, 0
      %p86 = por %p84, %p85
      %p87 = scmp.ne.s32.totalorder %s76, %s79
      %p88 = scmp.eq.s32.totalorder %s29, 1
      %p89 = por %p87, %p88
      %p90 = scmp.ne.s32.totalorder %s79, %s80
      %p91 = scmp.eq.s32.totalorder %s29, 0
      %p92 = por %p90, %p91
      %p93 = scmp.ne.s32.totalorder %s79, %s80
      %p94 = scmp.eq.s32.totalorder %s30, 1
      %p95 = por %p93, %p94
      %p97 = scmp.ne.s32.totalorder %s80, %s96
      %p98 = scmp.eq.s32.totalorder %s30, 0
      %p99 = por %p97, %p98
      %s101 = sadd.s32 %s100, 1
      %p104 = scmp.eq.s32.totalorder %s24, 1
      %p105 = scmp.ne.s32.totalorder %s100, %s102
      %p106 = scmp.eq.s32.totalorder %s24, 0
      %p107 = por %p105, %p106
      %p108 = scmp.ne.s32.totalorder %s100, %s102
      %p109 = scmp.eq.s32.totalorder %s29, 1
      %p110 = por %p108, %p109
      %p111 = scmp.ne.s32.totalorder %s102, %s103
      %p112 = scmp.eq.s32.totalorder %s29, 0
      %p113 = por %p111, %p112
      %p114 = scmp.ne.s32.totalorder %s102, %s103
      %p115 = scmp.eq.s32.totalorder %s30, 1
      %p116 = por %p114, %p115
      %p118 = scmp.ne.s32.totalorder %s103, %s117
      %p119 = scmp.eq.s32.totalorder %s30, 0
      %p120 = por %p118, %p119
      %s122 = sadd.s32 %s121, 1
      %p125 = scmp.eq.s32.totalorder %s24, 1
      %p126 = scmp.ne.s32.totalorder %s121, %s123
      %p127 = scmp.eq.s32.totalorder %s24, 0
      %p128 = por %p126, %p127
      %p129 = scmp.ne.s32.totalorder %s121, %s123
      %p130 = scmp.eq.s32.totalorder %s29, 1
      %p131 = por %p129, %p130
      %p132 = scmp.ne.s32.totalorder %s123, %s124
      %p133 = scmp.eq.s32.totalorder %s29, 0
      %p134 = por %p132, %p133
      %p135 = scmp.ne.s32.totalorder %s123, %s124
      %p136 = scmp.eq.s32.totalorder %s30, 1
      %p137 = por %p135, %p136
      %p139 = scmp.ne.s32.totalorder %s124, %s138
      %p140 = scmp.eq.s32.totalorder %s30, 0
      %p141 = por %p139, %p140
      %s143 = sadd.s32 %s142, 1
      %p146 = scmp.eq.s32.totalorder %s24, 1
      %p147 = scmp.ne.s32.totalorder %s142, %s144
      %p148 = scmp.eq.s32.totalorder %s24, 0
      %p149 = por %p147, %p148
      %p150 = scmp.ne.s32.totalorder %s142, %s144
      %p151 = scmp.eq.s32.totalorder %s29, 1
      %p152 = por %p150, %p151
      %p153 = scmp.ne.s32.totalorder %s144, %s145
      %p154 = scmp.eq.s32.totalorder %s29, 0
      %p155 = por %p153, %p154
      %p156 = scmp.ne.s32.totalorder %s144, %s145
      %p157 = scmp.eq.s32.totalorder %s30, 1
      %p158 = por %p156, %p157
      %p160 = scmp.ne.s32.totalorder %s145, %s159
      %p161 = scmp.eq.s32.totalorder %s30, 0
      %p162 = por %p160, %p161
      %s164 = sadd.s32 %s163, 1
      %p167 = scmp.eq.s32.totalorder %s24, 1
      %p168 = scmp.ne.s32.totalorder %s163, %s165
      %p169 = scmp.eq.s32.totalorder %s24, 0
      %p170 = por %p168, %p169
      %p171 = scmp.ne.s32.totalorder %s163, %s165
      %p172 = scmp.eq.s32.totalorder %s29, 1
      %p173 = por %p171, %p172
      %p174 = scmp.ne.s32.totalorder %s165, %s166
      %p175 = scmp.eq.s32.totalorder %s29, 0
      %p176 = por %p174, %p175
      %p177 = scmp.ne.s32.totalorder %s165, %s166
      %p178 = scmp.eq.s32.totalorder %s30, 1
      %p179 = por %p177, %p178
      %p181 = scmp.ne.s32.totalorder %s166, %s180
      %p182 = scmp.eq.s32.totalorder %s30, 0
      %p183 = por %p181, %p182
      %s184 = ssub.s32 %s24, %s31
      %p185 = scmp.eq.s32.totalorder %s184, 0
      %s187 = sadd.s32 %s186, 1
      %s188 = scalar_select %p185, %s186, %s187
      %p191 = pneg %p185
      %p192 = scmp.eq.s32.totalorder %s24, 1
      %p193 = por %p191, %p192
      %p194 = scmp.ne.s32.totalorder %s186, %s189
      %p195 = scmp.eq.s32.totalorder %s24, 0
      %p196 = por %p194, %p195
      %p197 = scmp.ne.s32.totalorder %s186, %s189
      %p198 = scmp.eq.s32.totalorder %s29, 1
      %p199 = por %p197, %p198
      %p200 = scmp.ne.s32.totalorder %s189, %s190
      %p201 = scmp.eq.s32.totalorder %s29, 0
      %p202 = por %p200, %p201
      %p203 = scmp.ne.s32.totalorder %s189, %s190
      %p204 = scmp.eq.s32.totalorder %s30, 1
      %p205 = por %p203, %p204
      %p207 = scmp.ne.s32.totalorder %s190, %s206
      %p208 = scmp.eq.s32.totalorder %s30, 0
      %p209 = por %p207, %p208
      %s210 = ssub.s32 %s24, %s31
      %p211 = scmp.eq.s32.totalorder %s210, 0
      %s213 = sadd.s32 %s212, 1
      %s214 = scalar_select %p211, %s212, %s213
      %p217 = pneg %p211
      %p218 = scmp.eq.s32.totalorder %s24, 1
      %p219 = por %p217, %p218
      %p220 = scmp.ne.s32.totalorder %s212, %s215
      %p221 = scmp.eq.s32.totalorder %s24, 0
      %p222 = por %p220, %p221
      %p223 = scmp.ne.s32.totalorder %s212, %s215
      %p224 = scmp.eq.s32.totalorder %s29, 1
      %p225 = por %p223, %p224
      %p226 = scmp.ne.s32.totalorder %s215, %s216
      %p227 = scmp.eq.s32.totalorder %s29, 0
      %p228 = por %p226, %p227
      %p229 = scmp.ne.s32.totalorder %s215, %s216
      %p230 = scmp.eq.s32.totalorder %s30, 1
      %p231 = por %p229, %p230
      %p233 = scmp.ne.s32.totalorder %s216, %s232
      %p234 = scmp.eq.s32.totalorder %s30, 0
      %p235 = por %p233, %p234
      %s236 = ssub.s32 %s24, %s31
      %p237 = scmp.eq.s32.totalorder %s236, 0
      %s239 = sadd.s32 %s238, 1
      %s240 = scalar_select %p237, %s238, %s239
      %p243 = pneg %p237
      %p244 = scmp.eq.s32.totalorder %s24, 1
      %p245 = por %p243, %p244
      %p246 = scmp.ne.s32.totalorder %s238, %s241
      %p247 = scmp.eq.s32.totalorder %s24, 0
      %p248 = por %p246, %p247
      %p249 = scmp.ne.s32.totalorder %s238, %s241
      %p250 = scmp.eq.s32.totalorder %s29, 1
      %p251 = por %p249, %p250
      %p252 = scmp.ne.s32.totalorder %s241, %s242
      %p253 = scmp.eq.s32.totalorder %s29, 0
      %p254 = por %p252, %p253
      %p255 = scmp.ne.s32.totalorder %s241, %s242
      %p256 = scmp.eq.s32.totalorder %s30, 1
      %p257 = por %p255, %p256
      %p259 = scmp.ne.s32.totalorder %s242, %s258
      %p260 = scmp.eq.s32.totalorder %s30, 0
      %p261 = por %p259, %p260
      %p262 = scmp.le.s32.totalorder 1, %s24
      %p263 = scmp.lt.s32.totalorder %s24, 3
      %p264 = pnand %p262, %p263
      %p265 = pneg %p264
      // Predicated region
      $region9: #{tpu_custom_call.1} parent=5 // pred_check
        _
      $region10: #{tpu_custom_call.1} parent=5 // pred_check_branch
        %267 = sbr.rel (%p264) target = $region12
      $region11: #{tpu_custom_call.1} parent=5 // pred_region
        %s268 = ssub.s32 %s24, 1
        // Predicated region
        $region13: #{tpu_custom_call.1} parent=11 // pred_check
          %p269 = pneg %p45
        $region14: #{tpu_custom_call.1} parent=11 // pred_check_branch
          %271 = sbr.rel (%p269) target = $region16
        $region15: #{tpu_custom_call.1} parent=11 // pred_region
          %273 = vsyncadd [#allocation4], 0
          %s275 = sshll.u32 %s0, 4
          %s276 = int_to_ptr.vmem [resolvable:$true] %s275
          %278 = dma.vmem_to_smem %s276, 16, [#allocation2], [#allocation4]
        $region16: #{tpu_custom_call.1} parent=11 // pred_fallthru
          _
        // Predicated region
        $region17: #{tpu_custom_call.1} parent=11 // pred_check
          %p279 = pneg %p66
        $region18: #{tpu_custom_call.1} parent=11 // pred_check_branch
          %281 = sbr.rel (%p279) target = $region20
        $region19: #{tpu_custom_call.1} parent=11 // pred_region
          %283 = vsyncadd [#allocation6], 0
          %s285 = sshll.u32 %s1, 4
          %s286 = int_to_ptr.vmem [resolvable:$true] %s285
          %288 = dma.vmem_to_smem %s286, 16, [#allocation5], [#allocation6]
        $region20: #{tpu_custom_call.1} parent=11 // pred_fallthru
          _
        // Predicated region
        $region21: #{tpu_custom_call.1} parent=11 // pred_check
          %p289 = pneg %p113
        $region22: #{tpu_custom_call.1} parent=11 // pred_check_branch
          %291 = sbr.rel (%p289) target = $region24
        $region23: #{tpu_custom_call.1} parent=11 // pred_region
          _
        $region24: #{tpu_custom_call.1} parent=11 // pred_fallthru
          _
        // Predicated region
        $region25: #{tpu_custom_call.1} parent=11 // pred_check
          %p292 = pneg %p134
        $region26: #{tpu_custom_call.1} parent=11 // pred_check_branch
          %294 = sbr.rel (%p292) target = $region28
        $region27: #{tpu_custom_call.1} parent=11 // pred_region
          _
        $region28: #{tpu_custom_call.1} parent=11 // pred_fallthru
          _
        // Predicated region
        $region29: #{tpu_custom_call.1} parent=11 // pred_check
          %p295 = pneg %p155
        $region30: #{tpu_custom_call.1} parent=11 // pred_check_branch
          %297 = sbr.rel (%p295) target = $region32
        $region31: #{tpu_custom_call.1} parent=11 // pred_region
          _
        $region32: #{tpu_custom_call.1} parent=11 // pred_fallthru
          _
        // Predicated region
        $region33: #{tpu_custom_call.1} parent=11 // pred_check
          %p298 = pneg %p176
        $region34: #{tpu_custom_call.1} parent=11 // pred_check_branch
          %300 = sbr.rel (%p298) target = $region36
        $region35: #{tpu_custom_call.1} parent=11 // pred_region
          _
        $region36: #{tpu_custom_call.1} parent=11 // pred_fallthru
          _
      $region12: #{tpu_custom_call.1} parent=5 // pred_fallthru
        _
      %p301 = scmp.lt.s32.totalorder %s24, 2
      // Predicated region
      $region37: #{tpu_custom_call.1} parent=5 // pred_check
        %p302 = pneg %p301
      $region38: #{tpu_custom_call.1} parent=5 // pred_check_branch
        %304 = sbr.rel (%p302) target = $region40
      $region39: #{tpu_custom_call.1} parent=5 // pred_region
        // Predicated region
        $region41: #{tpu_custom_call.1} parent=39 // pred_check
          %p305 = pneg %p86
        $region42: #{tpu_custom_call.1} parent=39 // pred_check_branch
          %307 = sbr.rel (%p305) target = $region44
        $region43: #{tpu_custom_call.1} parent=39 // pred_region
          %p308 = scmp.lt.s32.totalorder %s24, 1
          %s309 = scalar_select %p308, %s24, 1
          %s310 = smul.addr %s309, 8
          %s311 = scalar_lea.vmem %s2, %s310
        $region44: #{tpu_custom_call.1} parent=39 // pred_fallthru
          _
      $region40: #{tpu_custom_call.1} parent=5 // pred_fallthru
        _
      %p312 = scmp.le.s32.totalorder 1, %s24
      %p313 = scmp.lt.s32.totalorder %s24, 3
      %p314 = pnand %p312, %p313
      %p315 = pneg %p314
      // Predicated region
      $region45: #{tpu_custom_call.1} parent=5 // pred_check
        _
      $region46: #{tpu_custom_call.1} parent=5 // pred_check_branch
        %317 = sbr.rel (%p314) target = $region48
      $region47: #{tpu_custom_call.1} parent=5 // pred_region
        %s318 = ssub.s32 %s24, 1
        // Predicated region
        $region49: #{tpu_custom_call.1} parent=47 // pred_check
          %p319 = pneg %p45
        $region50: #{tpu_custom_call.1} parent=47 // pred_check_branch
          %321 = sbr.rel (%p319) target = $region52
        $region51: #{tpu_custom_call.1} parent=47 // pred_region
          %323 = dma.done [#allocation4], 16
        $region52: #{tpu_custom_call.1} parent=47 // pred_fallthru
          _
        // Predicated region
        $region53: #{tpu_custom_call.1} parent=47 // pred_check
          %p324 = pneg %p66
        $region54: #{tpu_custom_call.1} parent=47 // pred_check_branch
          %326 = sbr.rel (%p324) target = $region56
        $region55: #{tpu_custom_call.1} parent=47 // pred_region
          %328 = dma.done [#allocation6], 16
        $region56: #{tpu_custom_call.1} parent=47 // pred_fallthru
          _
        %329 = sfence
        %p330 = pneg %p45
        %p331 = pneg %p42
        %p332 = pneg %p66
        %p333 = pneg %p63
        %p334 = scmp.lt.s32.totalorder %s29, 1
        %s335 = scalar_select %p334, %s29, 1
        %s336 = smul.addr %s335, 8
        %s337 = scalar_lea.vmem %s2, %s336
        %p338 = pneg %p92
        %p339 = pneg %p89
        %p340 = pneg %p113
        %p341 = pneg %p110
        %p342 = pneg %p134
        %p343 = pneg %p131
        %p344 = pneg %p155
        %p345 = pneg %p152
        %p346 = pneg %p176
        %p347 = pneg %p173
        %p348 = pneg %p202
        %p349 = pneg %p199
        %s350 = sand.u32 %s189, 1
        %s351 = scalar_lea.sflag [#allocation3], %s350
        %s352 = sand.u32 %s189, 1
        %s353 = smul.addr %s352, 8
        %s354 = scalar_lea.vmem [#allocation7], %s353
        %p355 = pneg %p228
        %p356 = pneg %p225
        %s357 = sand.u32 %s29, 1
        %s358 = scalar_lea.sflag [#allocation9], %s357
        %s359 = sand.u32 %s215, 1
        %s360 = scalar_lea.vmem [#allocation8], %s359
        %p361 = pneg %p254
        %p362 = pneg %p251
        %s363 = sand.u32 %s29, 1
        %s364 = scalar_lea.sflag [#allocation9], %s363
        %s365 = sand.u32 %s241, 1
        %s366 = scalar_lea.vmem [#allocation10], %s365
        %p367 = scmp.lt.s32.totalorder %s29, 1
        %s368 = scalar_select %p367, %s29, 1
        %s369 = smul.addr %s368, 8
        %s370 = scalar_lea.vmem %s2, %s369
        %v371 = vld [vmem:[%s370] sm:$0xff]
        %v372 = vld [vmem:[%s3] sm:$0xff]
        %v373 = vld [vmem:[%s4] sm:$0xff]
        %375 = vset.pattern.permute.xlu0 0
        %376 = vperm.xlu0 %375, %v372
        %v377 = vpop.permute.xlu0 %376
        %v379 = vsub.f32 %v371, %v377
        %v380 = vmul.f32 %v379, -0.5
        %v381 = vmul.f32 %v380, %v379
        %v382 = vsub.f32 0.0, %v373
        %v383 = vmul.f32 %v382, 1.442695
        %v384 = vpow.pop %v383
        %386 = vset.pattern.permute.xlu0 0
        %387 = vperm.xlu0 %386, %v384
        %v388 = vpop.permute.xlu0 %387
        %v390 = vmul.f32 %v381, %v388
        %v391 = vmul.f32 %v373, 0.5
        %393 = vset.pattern.permute.xlu0 0
        %394 = vperm.xlu0 %393, %v391
        %v395 = vpop.permute.xlu0 %394
        %v397 = vsub.f32 %v390, %v395
        %v398 = vsub.f32 %v397, 0.9189385
        %v399 = vrot.slane %v398, 4
        %v400 = vadd.f32 %v398, %v399
        %v401 = vrot.slane %v400, 2
        %v402 = vadd.f32 %v400, %v401
        %v403 = vrot.slane %v402, 1
        %v404 = vadd.f32 %v402, %v403
        %405 = vst [vmem:[%s360] sm:$0x1] %v404
        %v406 = vld [vmem:[%s5] sm:$0xff]
        %v407 = vld [vmem:[%s6] sm:$0xff]
        %s408 = sld [smem:[#allocation2]]
        %s409 = sld [smem:[#allocation5]]
        %411 = vset.pattern.permute.xlu0 0
        %412 = vperm.xlu0 %411, %v406
        %v413 = vpop.permute.xlu0 %412
        %v415 = vmul.f32 %v371, %v413
        %v416 = vrot.slane %v415, 4
        %v417 = vadd.f32 %v415, %v416
        %v418 = vrot.slane %v417, 2
        %v419 = vadd.f32 %v417, %v418
        %v420 = vrot.slane %v419, 1
        %v421 = vadd.f32 %v419, %v420
        %v422 = vstv %s408
        %v423 = vadd.f32 %v421, %v422
        %v424 = vtanh.pop %v423
        %426 = vset.pattern.permute.xlu0 0
        %427 = vperm.xlu0 %426, %v407
        %v428 = vpop.permute.xlu0 %427
        %v430 = vmul.f32 %v428, %v424
        %v431 = vadd.f32 %v371, %v430
        %v432 = vmul.f32 %v424, %v424
        %v433 = vsub.f32 1.0, %v432
        %v434 = vstv %s409
        %v435 = vmul.f32 %v433, %v434
        %v436 = vadd.f32 %v435, 1.0
        %v437 = vand.u32 2147483647, %v436
        %v438 = vadd.f32 %v437, 1e-15
        %v439 = vlog2.pop %v438
        %v440 = vmul.f32 %v439, 0.6931472
        %v441 = vadd.f32 %v440, 0.0
        %s442 = sld [smem:[#allocation2 + $0x1]]
        %s443 = sld [smem:[#allocation5 + $0x1]]
        %444 = vset.pattern.permute.xlu0 1
        %445 = vperm.xlu0 %444, %v406
        %v446 = vpop.permute.xlu0 %445
        %v448 = vmul.f32 %v431, %v446
        %v449 = vrot.slane %v448, 4
        %v450 = vadd.f32 %v448, %v449
        %v451 = vrot.slane %v450, 2
        %v452 = vadd.f32 %v450, %v451
        %v453 = vrot.slane %v452, 1
        %v454 = vadd.f32 %v452, %v453
        %v455 = vstv %s442
        %v456 = vadd.f32 %v454, %v455
        %v457 = vtanh.pop %v456
        %458 = vset.pattern.permute.xlu0 1
        %459 = vperm.xlu0 %458, %v407
        %v460 = vpop.permute.xlu0 %459
        %v462 = vmul.f32 %v460, %v457
        %v463 = vadd.f32 %v431, %v462
        %v464 = vmul.f32 %v457, %v457
        %v465 = vsub.f32 1.0, %v464
        %v466 = vstv %s443
        %v467 = vmul.f32 %v465, %v466
        %v468 = vadd.f32 %v467, 1.0
        %v469 = vand.u32 2147483647, %v468
        %v470 = vadd.f32 %v469, 1e-15
        %v471 = vlog2.pop %v470
        %v472 = vmul.f32 %v471, 0.6931472
        %v473 = vadd.f32 %v441, %v472
        %s474 = sld [smem:[#allocation2 + $0x2]]
        %s475 = sld [smem:[#allocation5 + $0x2]]
        %476 = vset.pattern.permute.xlu0 2
        %477 = vperm.xlu0 %476, %v406
        %v478 = vpop.permute.xlu0 %477
        %v480 = vmul.f32 %v463, %v478
        %v481 = vrot.slane %v480, 4
        %v482 = vadd.f32 %v480, %v481
        %v483 = vrot.slane %v482, 2
        %v484 = vadd.f32 %v482, %v483
        %v485 = vrot.slane %v484, 1
        %v486 = vadd.f32 %v484, %v485
        %v487 = vstv %s474
        %v488 = vadd.f32 %v486, %v487
        %v489 = vtanh.pop %v488
        %490 = vset.pattern.permute.xlu0 2
        %491 = vperm.xlu0 %490, %v407
        %v492 = vpop.permute.xlu0 %491
        %v494 = vmul.f32 %v492, %v489
        %v495 = vadd.f32 %v463, %v494
        %v496 = vmul.f32 %v489, %v489
        %v497 = vsub.f32 1.0, %v496
        %v498 = vstv %s475
        %v499 = vmul.f32 %v497, %v498
        %v500 = vadd.f32 %v499, 1.0
        %v501 = vand.u32 2147483647, %v500
        %v502 = vadd.f32 %v501, 1e-15
        %v503 = vlog2.pop %v502
        %v504 = vmul.f32 %v503, 0.6931472
        %v505 = vadd.f32 %v473, %v504
        %s506 = sld [smem:[#allocation2 + $0x3]]
        %s507 = sld [smem:[#allocation5 + $0x3]]
        %508 = vset.pattern.permute.xlu0 3
        %509 = vperm.xlu0 %508, %v406
        %v510 = vpop.permute.xlu0 %509
        %v512 = vmul.f32 %v495, %v510
        %v513 = vrot.slane %v512, 4
        %v514 = vadd.f32 %v512, %v513
        %v515 = vrot.slane %v514, 2
        %v516 = vadd.f32 %v514, %v515
        %v517 = vrot.slane %v516, 1
        %v518 = vadd.f32 %v516, %v517
        %v519 = vstv %s506
        %v520 = vadd.f32 %v518, %v519
        %v521 = vtanh.pop %v520
        %522 = vset.pattern.permute.xlu0 3
        %523 = vperm.xlu0 %522, %v407
        %v524 = vpop.permute.xlu0 %523
        %v526 = vmul.f32 %v524, %v521
        %v527 = vadd.f32 %v495, %v526
        %v528 = vmul.f32 %v521, %v521
        %v529 = vsub.f32 1.0, %v528
        %v530 = vstv %s507
        %v531 = vmul.f32 %v529, %v530
        %v532 = vadd.f32 %v531, 1.0
        %v533 = vand.u32 2147483647, %v532
        %v534 = vadd.f32 %v533, 1e-15
        %v535 = vlog2.pop %v534
        %v536 = vmul.f32 %v535, 0.6931472
        %v537 = vadd.f32 %v505, %v536
        %538 = vst [vmem:[%s354] sm:$0xff] %v527
        %539 = vst [vmem:[%s366] sm:$0x1] %v537
        %s540 = sand.u32 %s189, 1
        %s541 = scalar_lea.sflag [#allocation3], %s540
        %s542 = sand.u32 %s189, 1
        %s543 = smul.addr %s542, 8
        %s544 = scalar_lea.vmem [#allocation7], %s543
        %s545 = sand.u32 %s29, 1
        %s546 = scalar_lea.sflag [#allocation9], %s545
        %s547 = sand.u32 %s215, 1
        %s548 = scalar_lea.vmem [#allocation8], %s547
        %s549 = sand.u32 %s29, 1
        %s550 = scalar_lea.sflag [#allocation9], %s549
        %s551 = sand.u32 %s241, 1
        %s552 = scalar_lea.vmem [#allocation10], %s551
        // Predicated region
        $region57: #{tpu_custom_call.1} parent=47 // pred_check
          %p553 = pneg %p199
        $region58: #{tpu_custom_call.1} parent=47 // pred_check_branch
          %555 = sbr.rel (%p553) target = $region60
        $region59: #{tpu_custom_call.1} parent=47 // pred_region
          %557 = vsyncadd %s541, 0
          %s558 = smul.addr %s29, 8
          %s559 = scalar_lea.hbm %s7, %s558
          %s561 = sshll.u32 %s544, 4
          %s562 = int_to_ptr.vmem [resolvable:$true] %s561
          %s563 = sshll.u32 %s559, 4
          %s564 = int_to_ptr.hbm [resolvable:$true] %s563
          %566 = dma.vmem_to_hbm [thread:$0]  %s562, 128, %s564, %s541
        $region60: #{tpu_custom_call.1} parent=47 // pred_fallthru
          _
        // Predicated region
        $region61: #{tpu_custom_call.1} parent=47 // pred_check
          %p567 = pneg %p225
        $region62: #{tpu_custom_call.1} parent=47 // pred_check_branch
          %569 = sbr.rel (%p567) target = $region64
        $region63: #{tpu_custom_call.1} parent=47 // pred_region
          %571 = vsyncadd %s546, 0
          %s572 = scalar_lea.hbm %s8, %s29
          %s574 = sshll.u32 %s548, 4
          %s575 = int_to_ptr.vmem [resolvable:$true] %s574
          %s576 = sshll.u32 %s572, 4
          %s577 = int_to_ptr.hbm [resolvable:$true] %s576
          %579 = dma.vmem_to_hbm [thread:$0]  %s575, 16, %s577, %s546
        $region64: #{tpu_custom_call.1} parent=47 // pred_fallthru
          _
        // Predicated region
        $region65: #{tpu_custom_call.1} parent=47 // pred_check
          %p580 = pneg %p251
        $region66: #{tpu_custom_call.1} parent=47 // pred_check_branch
          %582 = sbr.rel (%p580) target = $region68
        $region67: #{tpu_custom_call.1} parent=47 // pred_region
          %584 = vsyncadd %s550, 0
          %s585 = scalar_lea.hbm %s9, %s29
          %s587 = sshll.u32 %s552, 4
          %s588 = int_to_ptr.vmem [resolvable:$true] %s587
          %s589 = sshll.u32 %s585, 4
          %s590 = int_to_ptr.hbm [resolvable:$true] %s589
          %592 = dma.vmem_to_hbm [thread:$0]  %s588, 16, %s590, %s550
        $region68: #{tpu_custom_call.1} parent=47 // pred_fallthru
          _
      $region48: #{tpu_custom_call.1} parent=5 // pred_fallthru
        _
      %p593 = scmp.le.s32.totalorder 2, %s24
      // Predicated region
      $region69: #{tpu_custom_call.1} parent=5 // pred_check
        %p594 = pneg %p593
      $region70: #{tpu_custom_call.1} parent=5 // pred_check_branch
        %596 = sbr.rel (%p594) target = $region72
      $region71: #{tpu_custom_call.1} parent=5 // pred_region
        %s597 = ssub.s32 %s24, 2
        // Predicated region
        $region73: #{tpu_custom_call.1} parent=71 // pred_check
          %p598 = pneg %p205
        $region74: #{tpu_custom_call.1} parent=71 // pred_check_branch
          %600 = sbr.rel (%p598) target = $region76
        $region75: #{tpu_custom_call.1} parent=71 // pred_region
          %s601 = sand.u32 %s190, 1
          %s602 = scalar_lea.sflag [#allocation3], %s601
          %s603 = sand.u32 %s190, 1
          %s604 = smul.addr %s603, 8
          %s605 = scalar_lea.vmem [#allocation7], %s604
          %607 = dma.done %s602, 128
        $region76: #{tpu_custom_call.1} parent=71 // pred_fallthru
          _
        // Predicated region
        $region77: #{tpu_custom_call.1} parent=71 // pred_check
          %p608 = pneg %p231
        $region78: #{tpu_custom_call.1} parent=71 // pred_check_branch
          %610 = sbr.rel (%p608) target = $region80
        $region79: #{tpu_custom_call.1} parent=71 // pred_region
          %s611 = sand.u32 %s30, 1
          %s612 = scalar_lea.sflag [#allocation9], %s611
          %s613 = sand.u32 %s216, 1
          %s614 = scalar_lea.vmem [#allocation8], %s613
          %616 = dma.done %s612, 16
        $region80: #{tpu_custom_call.1} parent=71 // pred_fallthru
          _
        // Predicated region
        $region81: #{tpu_custom_call.1} parent=71 // pred_check
          %p617 = pneg %p257
        $region82: #{tpu_custom_call.1} parent=71 // pred_check_branch
          %619 = sbr.rel (%p617) target = $region84
        $region83: #{tpu_custom_call.1} parent=71 // pred_region
          %s620 = sand.u32 %s30, 1
          %s621 = scalar_lea.sflag [#allocation9], %s620
          %s622 = sand.u32 %s242, 1
          %s623 = scalar_lea.vmem [#allocation10], %s622
          %625 = dma.done %s621, 16
        $region84: #{tpu_custom_call.1} parent=71 // pred_fallthru
          _
      $region72: #{tpu_custom_call.1} parent=5 // pred_fallthru
        _
    $region6: #{tpu_custom_call.1} parent=1 // loop_footer
      %s28 = sadd.s32 1, %s24
    $region7: #{tpu_custom_call.1} parent=1 // loop_footer_branch
      %23 = sbr.rel target = $region3
    $region8: #{tpu_custom_call.1} parent=1 // loop_exit
      _
    %626 = vsyncpa [#allocation3], 1
    %s627 = scalar_lea.sflag [#allocation3], 1
    %628 = vsyncpa %s627, 1
    %629 = vsyncpa [#allocation9], 1
    %s630 = scalar_lea.sflag [#allocation9], 1
    %631 = vsyncpa %s630, 1
    %632 = vsyncpa [#allocation4], 1
    %s633 = scalar_lea.sflag [#allocation4], 1
    %634 = vsyncpa %s633, 1
    %635 = vsyncpa [#allocation6], 1

</llo_original>
